<compile_context>
chip_gen: v7x
topology: tpu7x:2x2x1
jax: 0.10.0
libtpu: 0.0.40
codegen_flags: <defaults>
</compile_context>

<pallas_src>
import jax
import jax.numpy as jnp
from jax.experimental import pallas as pl
from jax.experimental.pallas import tpu as pltpu


def _downstream_kernel(x_ref, w1t_ref, b1_ref, w2t_ref, b2_ref, o_ref):
    # x_ref  : (C_in, TL)   channel-first tile, L on the lane axis
    # w1t_ref: (H, C_in)    preprocess 1x1-conv weight, pre-transposed
    # b1_ref : (H, 1)
    # w2t_ref: (C_out, H)   downstream 1x1-conv weight, pre-transposed
    # b2_ref : (C_out, 1)
    # o_ref  : (C_out, TL)
    x = x_ref[...]
    h = jnp.dot(w1t_ref[...], x, preferred_element_type=jnp.float32)      # (H, TL)
    h = jnp.maximum(h + b1_ref[...], 0.0)                                  # preprocess ReLU
    y = jnp.dot(w2t_ref[...], h.astype(w2t_ref.dtype),
                preferred_element_type=jnp.float32)                        # (C_out, TL)
    o_ref[...] = (y + b2_ref[...]).astype(o_ref.dtype)


def downstream_model_forward(x, w1, b1, w2, b2, *, l_tile=1024):
    """x: (N, L, C_in) -> (N, L, C_out), channel-last I/O matching the PyTorch
    module's external (batch, seq, channels) convention. Internally computes in
    the module's conv layout (N, C, L) with L on the TPU lane axis."""
    N, L, C_in = x.shape
    H = w1.shape[1]
    C_out = w2.shape[1]

    # Module's own first transpose: external (N, L, C_in) -> conv layout (N, C_in, L).
    x_cf = jnp.transpose(x, (0, 2, 1))

    # Lane-dense tiling over L: tile must be a multiple of 128 lanes.
    l_tile = max(128, (l_tile // 128) * 128)
    l_min = ((L + 127) // 128) * 128
    if l_min <= l_tile:
        l_tile = l_min
    L_pad = ((L + l_tile - 1) // l_tile) * l_tile
    if L_pad != L:
        x_cf = jnp.pad(x_cf, ((0, 0), (0, 0), (0, L_pad - L)))

    # Pre-transpose weights so the kernel runs channel-first without in-kernel
    # transposes; biases become column vectors broadcast along lanes.
    w1t = jnp.transpose(w1)            # (H, C_in)
    w2t = jnp.transpose(w2)            # (C_out, H)
    b1c = b1.reshape(H, 1)
    b2c = b2.reshape(C_out, 1)

    grid = (N, L_pad // l_tile)

    y_cf = pl.pallas_call(
        _downstream_kernel,
        out_shape=jax.ShapeDtypeStruct((N, C_out, L_pad), x.dtype),
        grid_spec=pltpu.PrefetchScalarGridSpec(
            num_scalar_prefetch=0,
            grid=grid,
            in_specs=[
                # batch dim squeezed; (C_in, l_tile) tile, lane-dense in L
                pl.BlockSpec((None, C_in, l_tile), lambda n, l: (n, 0, l)),
                pl.BlockSpec((H, C_in), lambda n, l: (0, 0)),
                pl.BlockSpec((H, 1), lambda n, l: (0, 0)),
                pl.BlockSpec((C_out, H), lambda n, l: (0, 0)),
                pl.BlockSpec((C_out, 1), lambda n, l: (0, 0)),
            ],
            out_specs=pl.BlockSpec((None, C_out, l_tile), lambda n, l: (n, 0, l)),
        ),
        compiler_params=pltpu.CompilerParams(
            dimension_semantics=("parallel", "parallel")),
    )(x_cf, w1t, b1c, w2t, b2c)

    # Drop L padding, then the module's final transpose back to (N, L, C_out).
    return jnp.transpose(y_cf[:, :, :L], (0, 2, 1))


def reference_forward(x, w1, b1, w2, b2):
    """Pure-JAX reference replicating the PyTorch forward exactly
    (transpose -> conv1x1 -> relu -> conv1x1 -> transpose)."""
    xt = jnp.transpose(x, (0, 2, 1))                     # (N, C_in, L)
    h = jnp.einsum('ncl,ch->nhl', xt, w1) + b1[None, :, None]
    h = jnp.maximum(h, 0.0)
    y = jnp.einsum('nhl,ho->nol', h, w2) + b2[None, :, None]
    return jnp.transpose(y, (0, 2, 1))                   # (N, L, C_out)


if __name__ == "__main__":
    # Small shapes consistent with the module: batch=2, seq=16, 4 input
    # channels (one-hot nucleotides), starting_channels=32, 3 output classes.
    N, L, C_IN, H, C_OUT = 2, 16, 4, 32, 3

    key = jax.random.PRNGKey(0)
    kx, k1, kb1, k2, kb2 = jax.random.split(key, 5)

    x = jax.random.normal(kx, (N, L, C_IN), dtype=jnp.float32)
    w1 = jax.random.normal(k1, (C_IN, H), dtype=jnp.float32) * 0.1
    b1 = jax.random.normal(kb1, (H,), dtype=jnp.float32) * 0.1
    w2 = jax.random.normal(k2, (H, C_OUT), dtype=jnp.float32) * 0.1
    b2 = jax.random.normal(kb2, (C_OUT,), dtype=jnp.float32) * 0.1

    y = downstream_model_forward(x, w1, b1, w2, b2)
    y = jax.block_until_ready(y)

    y_ref = reference_forward(x, w1, b1, w2, b2)
    assert y.shape == (N, L, C_OUT)
    assert jnp.allclose(y, y_ref, atol=1e-5, rtol=1e-5), "mismatch vs reference"

    print("KERNEL_OK")
</pallas_src>

<mosaic_0001>
module attributes {stable_mosaic.version = 11 : i64} {
  func.func @_downstream_kernel(%arg0: i32, %arg1: i32, %arg2: memref<1x4x128xf32, #tpu.memory_space<vmem>>, %arg3: memref<32x4xf32, #tpu.memory_space<vmem>>, %arg4: memref<32x1xf32, #tpu.memory_space<vmem>>, %arg5: memref<3x32xf32, #tpu.memory_space<vmem>>, %arg6: memref<3x1xf32, #tpu.memory_space<vmem>>, %arg7: memref<1x3x128xf32, #tpu.memory_space<vmem>>) attributes {dimension_semantics = [#tpu.dimension_semantics<parallel>, #tpu.dimension_semantics<parallel>], iteration_bounds = array<i64: 2, 1>, scalar_prefetch = 0 : i64, scratch_operands = 0 : i64, tpu.core_type = #tpu.core_type<tc>, window_params = [{transform_indices = @transform_0, window_bounds = array<i64: 1, 4, 128>}, {pipeline_mode = #tpu.pipeline_mode<synchronous>, transform_indices = @transform_1, window_bounds = array<i64: 32, 4>}, {pipeline_mode = #tpu.pipeline_mode<synchronous>, transform_indices = @transform_2, window_bounds = array<i64: 32, 1>}, {pipeline_mode = #tpu.pipeline_mode<synchronous>, transform_indices = @transform_3, window_bounds = array<i64: 3, 32>}, {pipeline_mode = #tpu.pipeline_mode<synchronous>, transform_indices = @transform_4, window_bounds = array<i64: 3, 1>}, {transform_indices = @transform_5, window_bounds = array<i64: 1, 3, 128>}]} {
    %c0 = arith.constant 0 : index
    %c0_0 = arith.constant 0 : index
    %c0_1 = arith.constant 0 : index
    %0 = vector.load %arg2[%c0, %c0_0, %c0_1] : memref<1x4x128xf32, #tpu.memory_space<vmem>>, vector<1x4x128xf32>
    %1 = vector.shape_cast %0 : vector<1x4x128xf32> to vector<4x128xf32>
    %c0_2 = arith.constant 0 : index
    %c0_3 = arith.constant 0 : index
    %2 = vector.load %arg3[%c0_2, %c0_3] : memref<32x4xf32, #tpu.memory_space<vmem>>, vector<32x4xf32>
    %cst = arith.constant dense<0.000000e+00> : vector<32x128xf32>
    %3 = tpu.matmul %2, %1, %cst {dimension_numbers = #tpu.dot_dimension_numbers<[1], [0], [0], [1], [0, 0, 1, 1], [], []>} : vector<32x4xf32>, vector<4x128xf32>, vector<32x128xf32> -> vector<32x128xf32>
    %c0_4 = arith.constant 0 : index
    %c0_5 = arith.constant 0 : index
    %4 = vector.load %arg4[%c0_4, %c0_5] : memref<32x1xf32, #tpu.memory_space<vmem>>, vector<32x1xf32>
    %5 = vector.broadcast %4 : vector<32x1xf32> to vector<32x128xf32>
    %6 = arith.addf %3, %5 : vector<32x128xf32>
    %cst_6 = arith.constant 0.000000e+00 : f32
    %7 = vector.broadcast %cst_6 : f32 to vector<32x128xf32>
    %8 = arith.maximumf %6, %7 : vector<32x128xf32>
    %c0_7 = arith.constant 0 : index
    %c0_8 = arith.constant 0 : index
    %9 = vector.load %arg5[%c0_7, %c0_8] : memref<3x32xf32, #tpu.memory_space<vmem>>, vector<3x32xf32>
    %cst_9 = arith.constant dense<0.000000e+00> : vector<3x128xf32>
    %10 = tpu.matmul %9, %8, %cst_9 {dimension_numbers = #tpu.dot_dimension_numbers<[1], [0], [0], [1], [0, 0, 1, 1], [], []>} : vector<3x32xf32>, vector<32x128xf32>, vector<3x128xf32> -> vector<3x128xf32>
    %c0_10 = arith.constant 0 : index
    %c0_11 = arith.constant 0 : index
    %11 = vector.load %arg6[%c0_10, %c0_11] : memref<3x1xf32, #tpu.memory_space<vmem>>, vector<3x1xf32>
    %12 = vector.broadcast %11 : vector<3x1xf32> to vector<3x128xf32>
    %13 = arith.addf %10, %12 : vector<3x128xf32>
    %c0_12 = arith.constant 0 : index
    %c0_13 = arith.constant 0 : index
    %c0_14 = arith.constant 0 : index
    %14 = vector.load %arg7[%c0_12, %c0_13, %c0_14] : memref<1x3x128xf32, #tpu.memory_space<vmem>>, vector<1x3x128xf32>
    %15 = vector.shape_cast %14 : vector<1x3x128xf32> to vector<3x128xf32>
    %16 = vector.shape_cast %13 : vector<3x128xf32> to vector<1x3x128xf32>
    tpu.vector_store %arg7[%c0_12, %c0_13, %c0_14], %16 {strides = array<i32>} : memref<1x3x128xf32, #tpu.memory_space<vmem>>, vector<1x3x128xf32>,
    return
  }
  func.func @transform_0(%arg0: i32, %arg1: i32) -> (i32, i32, i32) {
    %c0_i32 = arith.constant 0 : i32
    %c0_i32_0 = arith.constant 0 : i32
    return %arg0, %c0_i32, %arg1 : i32, i32, i32
  }
  func.func @transform_1(%arg0: i32, %arg1: i32) -> (i32, i32) {
    %c0_i32 = arith.constant 0 : i32
    %c0_i32_0 = arith.constant 0 : i32
    %c0_i32_1 = arith.constant 0 : i32
    return %c0_i32, %c0_i32_0 : i32, i32
  }
  func.func @transform_2(%arg0: i32, %arg1: i32) -> (i32, i32) {
    %c0_i32 = arith.constant 0 : i32
    %c0_i32_0 = arith.constant 0 : i32
    %c0_i32_1 = arith.constant 0 : i32
    return %c0_i32, %c0_i32_0 : i32, i32
  }
  func.func @transform_3(%arg0: i32, %arg1: i32) -> (i32, i32) {
    %c0_i32 = arith.constant 0 : i32
    %c0_i32_0 = arith.constant 0 : i32
    %c0_i32_1 = arith.constant 0 : i32
    return %c0_i32, %c0_i32_0 : i32, i32
  }
  func.func @transform_4(%arg0: i32, %arg1: i32) -> (i32, i32) {
    %c0_i32 = arith.constant 0 : i32
    %c0_i32_0 = arith.constant 0 : i32
    %c0_i32_1 = arith.constant 0 : i32
    return %c0_i32, %c0_i32_0 : i32, i32
  }
  func.func @transform_5(%arg0: i32, %arg1: i32) -> (i32, i32, i32) {
    %c0_i32 = arith.constant 0 : i32
    %c0_i32_0 = arith.constant 0 : i32
    return %arg0, %c0_i32, %arg1 : i32, i32, i32
  }
}

</mosaic_0001>

<llo_original>
// kernel: tpu_custom_call.1
$region0: #{tpu_custom_call.1}
  #allocation0 [shape = 'u32[]', space=smem, size = 0x4, offset = 0x4, fixed_abs, tag = 'smem constant byte address 0x4 - core index']
  #allocation1 [shape = 'u32[144,128]{1,0:T(1,128)}', space=vmem, size = 0x12000, scoped, tag = 'internal scratch']
  %s0 = inlined_call_operand.vmem [shape: f32[2,4,128], index: 0, kind: input, shape index: {}]
  %s1 = inlined_call_operand.vmem [shape: f32[32,4], index: 1, kind: input, shape index: {}]
  %s2 = inlined_call_operand.vmem [shape: f32[32,1], index: 2, kind: input, shape index: {}]
  %s3 = inlined_call_operand.vmem [shape: f32[3,32], index: 3, kind: input, shape index: {}]
  %s4 = inlined_call_operand.vmem [shape: f32[3,1], index: 4, kind: input, shape index: {}]
  %s5 = inlined_call_operand.vmem [shape: f32[2,3,128], index: 5, kind: output, shape index: {}]
  %s6 = sld [smem:[#allocation0]]
  $region53: #{tpu_custom_call.1} parent=0
    _
  %s8 = ssub.s32 1, %s6
  %s9 = scalar_select 0, %s8, %s6
  loop: start=0, step=1, limit=4
  $region2: #{tpu_custom_call.1} parent=0 // loop_pre_header
    _
  $region3: #{tpu_custom_call.1} parent=0 // loop_header
    %s11 = sphi 0, %s15
    %p12 = scmp.ge.s32.totalorder %s11, 4
    %s18 = sphi 0, %s30
    %s19 = sphi 0, %s26
    %s20 = sphi 0, %s18
    %s21 = sphi 0, %s19
    %s22 = sphi 0, %s20
    %s23 = sphi 0, %s21
    %s35 = sphi 0, %s37
    %s38 = sphi 0, %s35
    %s39 = sphi 0, %s38
    %s55 = sphi 0, %s39
    %s59 = sphi 0, %s59
    %s61 = sphi 0, %s59
    %s62 = sphi 0, %s61
    %s76 = sphi 0, %s62
    %s80 = sphi 0, %s80
    %s82 = sphi 0, %s80
    %s83 = sphi 0, %s82
    %s97 = sphi 0, %s83
    %s101 = sphi 0, %s101
    %s103 = sphi 0, %s101
    %s104 = sphi 0, %s103
    %s118 = sphi 0, %s104
    %s122 = sphi 0, %s122
    %s124 = sphi 0, %s122
    %s125 = sphi 0, %s124
    %s139 = sphi 0, %s125
    %s147 = sphi 0, %s149
    %s150 = sphi 0, %s147
    %s151 = sphi 0, %s150
    %s167 = sphi 0, %s151
  $region4: #{tpu_custom_call.1} parent=0 // loop_header_branch
    %14 = sbr.rel (%p12) target = $region8
  $region5: #{tpu_custom_call.1} parent=0 // loop_body
    %s16 = ssub.s32 %s11, 1
    %s17 = ssub.s32 %s11, 2
    %s24 = sadd.s32 1, %s19
    %p25 = scmp.ge.s32.totalorder %s24, 1
    %s26 = scalar_select %p25, 0, %s24
    %s27 = sadd.s32 1, %s18
    %s28 = scalar_select %p25, %s27, %s18
    %p29 = scmp.ge.s32.totalorder %s28, 2
    %s30 = scalar_select %p29, 0, %s28
    %s31 = ssub.s32 %s18, %s30
    %s32 = ssub.s32 %s19, %s26
    %s33 = sor.u32 %s31, %s32
    %p34 = scmp.eq.s32.totalorder %s33, 0
    %s36 = sadd.s32 %s35, 1
    %s37 = scalar_select %p34, %s35, %s36
    %p40 = pneg %p34
    %p41 = scmp.eq.s32.totalorder %s11, 1
    %p42 = por %p40, %p41
    %p43 = scmp.ne.s32.totalorder %s35, %s38
    %p44 = scmp.eq.s32.totalorder %s11, 0
    %p45 = por %p43, %p44
    %p46 = scmp.ne.s32.totalorder %s35, %s38
    %p47 = scmp.eq.s32.totalorder %s16, 1
    %p48 = por %p46, %p47
    %p49 = scmp.ne.s32.totalorder %s38, %s39
    %p50 = scmp.eq.s32.totalorder %s16, 0
    %p51 = por %p49, %p50
    %p52 = scmp.ne.s32.totalorder %s38, %s39
    %p53 = scmp.eq.s32.totalorder %s17, 1
    %p54 = por %p52, %p53
    %p56 = scmp.ne.s32.totalorder %s39, %s55
    %p57 = scmp.eq.s32.totalorder %s17, 0
    %p58 = por %p56, %p57
    %s60 = sadd.s32 %s59, 1
    %p63 = scmp.eq.s32.totalorder %s11, 1
    %p64 = scmp.ne.s32.totalorder %s59, %s61
    %p65 = scmp.eq.s32.totalorder %s11, 0
    %p66 = por %p64, %p65
    %p67 = scmp.ne.s32.totalorder %s59, %s61
    %p68 = scmp.eq.s32.totalorder %s16, 1
    %p69 = por %p67, %p68
    %p70 = scmp.ne.s32.totalorder %s61, %s62
    %p71 = scmp.eq.s32.totalorder %s16, 0
    %p72 = por %p70, %p71
    %p73 = scmp.ne.s32.totalorder %s61, %s62
    %p74 = scmp.eq.s32.totalorder %s17, 1
    %p75 = por %p73, %p74
    %p77 = scmp.ne.s32.totalorder %s62, %s76
    %p78 = scmp.eq.s32.totalorder %s17, 0
    %p79 = por %p77, %p78
    %s81 = sadd.s32 %s80, 1
    %p84 = scmp.eq.s32.totalorder %s11, 1
    %p85 = scmp.ne.s32.totalorder %s80, %s82
    %p86 = scmp.eq.s32.totalorder %s11, 0
    %p87 = por %p85, %p86
    %p88 = scmp.ne.s32.totalorder %s80, %s82
    %p89 = scmp.eq.s32.totalorder %s16, 1
    %p90 = por %p88, %p89
    %p91 = scmp.ne.s32.totalorder %s82, %s83
    %p92 = scmp.eq.s32.totalorder %s16, 0
    %p93 = por %p91, %p92
    %p94 = scmp.ne.s32.totalorder %s82, %s83
    %p95 = scmp.eq.s32.totalorder %s17, 1
    %p96 = por %p94, %p95
    %p98 = scmp.ne.s32.totalorder %s83, %s97
    %p99 = scmp.eq.s32.totalorder %s17, 0
    %p100 = por %p98, %p99
    %s102 = sadd.s32 %s101, 1
    %p105 = scmp.eq.s32.totalorder %s11, 1
    %p106 = scmp.ne.s32.totalorder %s101, %s103
    %p107 = scmp.eq.s32.totalorder %s11, 0
    %p108 = por %p106, %p107
    %p109 = scmp.ne.s32.totalorder %s101, %s103
    %p110 = scmp.eq.s32.totalorder %s16, 1
    %p111 = por %p109, %p110
    %p112 = scmp.ne.s32.totalorder %s103, %s104
    %p113 = scmp.eq.s32.totalorder %s16, 0
    %p114 = por %p112, %p113
    %p115 = scmp.ne.s32.totalorder %s103, %s104
    %p116 = scmp.eq.s32.totalorder %s17, 1
    %p117 = por %p115, %p116
    %p119 = scmp.ne.s32.totalorder %s104, %s118
    %p120 = scmp.eq.s32.totalorder %s17, 0
    %p121 = por %p119, %p120
    %s123 = sadd.s32 %s122, 1
    %p126 = scmp.eq.s32.totalorder %s11, 1
    %p127 = scmp.ne.s32.totalorder %s122, %s124
    %p128 = scmp.eq.s32.totalorder %s11, 0
    %p129 = por %p127, %p128
    %p130 = scmp.ne.s32.totalorder %s122, %s124
    %p131 = scmp.eq.s32.totalorder %s16, 1
    %p132 = por %p130, %p131
    %p133 = scmp.ne.s32.totalorder %s124, %s125
    %p134 = scmp.eq.s32.totalorder %s16, 0
    %p135 = por %p133, %p134
    %p136 = scmp.ne.s32.totalorder %s124, %s125
    %p137 = scmp.eq.s32.totalorder %s17, 1
    %p138 = por %p136, %p137
    %p140 = scmp.ne.s32.totalorder %s125, %s139
    %p141 = scmp.eq.s32.totalorder %s17, 0
    %p142 = por %p140, %p141
    %s143 = ssub.s32 %s18, %s30
    %s144 = ssub.s32 %s19, %s26
    %s145 = sor.u32 %s143, %s144
    %p146 = scmp.eq.s32.totalorder %s145, 0
    %s148 = sadd.s32 %s147, 1
    %s149 = scalar_select %p146, %s147, %s148
    %p152 = pneg %p146
    %p153 = scmp.eq.s32.totalorder %s11, 1
    %p154 = por %p152, %p153
    %p155 = scmp.ne.s32.totalorder %s147, %s150
    %p156 = scmp.eq.s32.totalorder %s11, 0
    %p157 = por %p155, %p156
    %p158 = scmp.ne.s32.totalorder %s147, %s150
    %p159 = scmp.eq.s32.totalorder %s16, 1
    %p160 = por %p158, %p159
    %p161 = scmp.ne.s32.totalorder %s150, %s151
    %p162 = scmp.eq.s32.totalorder %s16, 0
    %p163 = por %p161, %p162
    %p164 = scmp.ne.s32.totalorder %s150, %s151
    %p165 = scmp.eq.s32.totalorder %s17, 1
    %p166 = por %p164, %p165
    %p168 = scmp.ne.s32.totalorder %s151, %s167
    %p169 = scmp.eq.s32.totalorder %s17, 0
    %p170 = por %p168, %p169
    %p171 = scmp.le.s32.totalorder 1, %s11
    %p172 = scmp.lt.s32.totalorder %s11, 3
    %p173 = pnand %p171, %p172
    %p174 = pneg %p173
    // Predicated region
    $region9: #{tpu_custom_call.1} parent=5 // pred_check
      _
    $region10: #{tpu_custom_call.1} parent=5 // pred_check_branch
      %176 = sbr.rel (%p173) target = $region12
    $region11: #{tpu_custom_call.1} parent=5 // pred_region
      %s177 = ssub.s32 %s11, 1
      // Predicated region
      $region13: #{tpu_custom_call.1} parent=11 // pred_check
        %p178 = pneg %p72
      $region14: #{tpu_custom_call.1} parent=11 // pred_check_branch
        %180 = sbr.rel (%p178) target = $region16
      $region15: #{tpu_custom_call.1} parent=11 // pred_region
        _
      $region16: #{tpu_custom_call.1} parent=11 // pred_fallthru
        _
      // Predicated region
      $region17: #{tpu_custom_call.1} parent=11 // pred_check
        %p181 = pneg %p93
      $region18: #{tpu_custom_call.1} parent=11 // pred_check_branch
        %183 = sbr.rel (%p181) target = $region20
      $region19: #{tpu_custom_call.1} parent=11 // pred_region
        _
      $region20: #{tpu_custom_call.1} parent=11 // pred_fallthru
        _
      // Predicated region
      $region21: #{tpu_custom_call.1} parent=11 // pred_check
        %p184 = pneg %p114
      $region22: #{tpu_custom_call.1} parent=11 // pred_check_branch
        %186 = sbr.rel (%p184) target = $region24
      $region23: #{tpu_custom_call.1} parent=11 // pred_region
        _
      $region24: #{tpu_custom_call.1} parent=11 // pred_fallthru
        _
      // Predicated region
      $region25: #{tpu_custom_call.1} parent=11 // pred_check
        %p187 = pneg %p135
      $region26: #{tpu_custom_call.1} parent=11 // pred_check_branch
        %189 = sbr.rel (%p187) target = $region28
      $region27: #{tpu_custom_call.1} parent=11 // pred_region
        _
      $region28: #{tpu_custom_call.1} parent=11 // pred_fallthru
        _
    $region12: #{tpu_custom_call.1} parent=5 // pred_fallthru
      _
    %p190 = scmp.lt.s32.totalorder %s11, 2
    // Predicated region
    $region29: #{tpu_custom_call.1} parent=5 // pred_check
      %p191 = pneg %p190
    $region30: #{tpu_custom_call.1} parent=5 // pred_check_branch
      %193 = sbr.rel (%p191) target = $region32
    $region31: #{tpu_custom_call.1} parent=5 // pred_region
      // Predicated region
      $region33: #{tpu_custom_call.1} parent=31 // pred_check
        %p194 = pneg %p45
      $region34: #{tpu_custom_call.1} parent=31 // pred_check_branch
        %196 = sbr.rel (%p194) target = $region36
      $region35: #{tpu_custom_call.1} parent=31 // pred_region
        %p197 = scmp.lt.s32.totalorder %s18, 1
        %s198 = scalar_select %p197, %s18, 1
        %p199 = scmp.lt.s32.totalorder %s19, 0
        %s200 = scalar_select %p199, %s19, 0
        %s201 = sadd.s32 %s200, %s198
        %s202 = smul.addr %s201, 4
        %s203 = scalar_lea.vmem %s0, %s202
      $region36: #{tpu_custom_call.1} parent=31 // pred_fallthru
        _
    $region32: #{tpu_custom_call.1} parent=5 // pred_fallthru
      _
    %p204 = scmp.le.s32.totalorder 1, %s11
    %p205 = scmp.lt.s32.totalorder %s11, 3
    %p206 = pnand %p204, %p205
    %p207 = pneg %p206
    // Predicated region
    $region37: #{tpu_custom_call.1} parent=5 // pred_check
      _
    $region38: #{tpu_custom_call.1} parent=5 // pred_check_branch
      %209 = sbr.rel (%p206) target = $region40
    $region39: #{tpu_custom_call.1} parent=5 // pred_region
      %s210 = ssub.s32 %s11, 1
      %p211 = scmp.lt.s32.totalorder %s20, 1
      %s212 = scalar_select %p211, %s20, 1
      %p213 = scmp.lt.s32.totalorder %s21, 0
      %s214 = scalar_select %p213, %s21, 0
      %s215 = sadd.s32 %s214, %s212
      %s216 = smul.addr %s215, 4
      %s217 = scalar_lea.vmem %s0, %s216
      %p218 = pneg %p51
      %p219 = pneg %p48
      %p220 = pneg %p72
      %p221 = pneg %p69
      %p222 = pneg %p93
      %p223 = pneg %p90
      %p224 = pneg %p114
      %p225 = pneg %p111
      %p226 = pneg %p135
      %p227 = pneg %p132
      %p228 = pneg %p163
      %p229 = pneg %p160
      %p230 = scmp.lt.s32.totalorder %s20, 1
      %s231 = scalar_select %p230, %s20, 1
      %p232 = scmp.lt.s32.totalorder %s21, 0
      %s233 = scalar_select %p232, %s21, 0
      %s234 = sadd.s32 %s233, %s231
      %s235 = smul.addr %s234, 4
      %s236 = scalar_lea.vmem %s5, %s235
      %p237 = scmp.lt.s32.totalorder %s20, 1
      %s238 = scalar_select %p237, %s20, 1
      %p239 = scmp.lt.s32.totalorder %s21, 0
      %s240 = scalar_select %p239, %s21, 0
      %s241 = sadd.s32 %s240, %s238
      %s242 = smul.addr %s241, 4
      %s243 = scalar_lea.vmem %s0, %s242
      %p244 = scmp.lt.s32.totalorder %s20, 1
      %s245 = scalar_select %p244, %s20, 1
      %p246 = scmp.lt.s32.totalorder %s21, 0
      %s247 = scalar_select %p246, %s21, 0
      %s248 = sadd.s32 %s247, %s245
      %s249 = smul.addr %s248, 4
      %s250 = scalar_lea.vmem %s5, %s249
      %v251 = vld [vmem:[%s243] sm:$0xf]
      %v252 = vld [vmem:[%s1] sm:$0xff]
      %v253 = vld [vmem:[%s1 + $0x8] sm:$0xff]
      %v254 = vld [vmem:[%s1 + $0x10] sm:$0xff]
      %v255 = vld [vmem:[%s1 + $0x18] sm:$0xff]
      %v256 = vld [vmem:[%s2] sm:$0xff]
      %v257 = vld [vmem:[%s2 + $0x8] sm:$0xff]
      %v258 = vld [vmem:[%s2 + $0x10] sm:$0xff]
      %v259 = vld [vmem:[%s2 + $0x18] sm:$0xff]
      %261 = vset.pattern.permute.xlu0 0
      %262 = vperm.xlu0 %261, %v256
      %v263 = vpop.permute.xlu0 %262
      %266 = vset.pattern.permute.xlu0 0
      %267 = vperm.xlu0 %266, %v257
      %v268 = vpop.permute.xlu0 %267
      %271 = vset.pattern.permute.xlu0 0
      %272 = vperm.xlu0 %271, %v258
      %v273 = vpop.permute.xlu0 %272
      %276 = vset.pattern.permute.xlu0 0
      %277 = vperm.xlu0 %276, %v259
      %v278 = vpop.permute.xlu0 %277
      %vm280 = vcmask 31744
      %v282 = vsel %vm280, %v252, 0
      %v285 = vsel %vm280, %v253, 0
      %v288 = vsel %vm280, %v254, 0
      %v291 = vsel %vm280, %v255, 0
      %vm293 = vcmask 1043456
      %v295 = vsel %vm293, %v251, 0
      %297 = vmatprep.subr.mxu0 0.0
      %298 = vmatpush1.msra.mxu0 %v295
      %299 = vmatprep.subr.mxu0 0.0
      %300 = vmatpush1.msra.mxu0 0.0
      %301 = vmatprep.subr.mxu0 0.0
      %302 = vmatpush1.msra.mxu0 0.0
      %303 = vmatprep.subr.mxu0 0.0
      %304 = vmatpush1.msra.mxu0 0.0
      %305 = vmatprep.subr.mxu0 0.0
      %306 = vmatpush1.msra.mxu0 0.0
      %307 = vmatprep.subr.mxu0 0.0
      %308 = vmatpush1.msra.mxu0 0.0
      %309 = vmatprep.subr.mxu0 0.0
      %310 = vmatpush1.msra.mxu0 0.0
      %311 = vmatprep.subr.mxu0 0.0
      %312 = vmatpush1.msra.mxu0 0.0
      %313 = vmatprep.subr.mxu0 0.0
      %314 = vmatpush1.msra.mxu0 0.0
      %315 = vmatprep.subr.mxu0 0.0
      %316 = vmatpush1.msra.mxu0 0.0
      %317 = vmatprep.subr.mxu0 0.0
      %318 = vmatpush1.msra.mxu0 0.0
      %319 = vmatprep.subr.mxu0 0.0
      %320 = vmatpush1.msra.mxu0 0.0
      %321 = vmatprep.subr.mxu0 0.0
      %322 = vmatpush1.msra.mxu0 0.0
      %323 = vmatprep.subr.mxu0 0.0
      %324 = vmatpush1.msra.mxu0 0.0
      %325 = vmatprep.subr.mxu0 0.0
      %326 = vmatpush1.msra.mxu0 0.0
      %327 = vmatprep.subr.mxu0 0.0
      %328 = vmatpush1.msra.mxu0 0.0
      %329 = vmatprep.subr.mxu0 0.0
      %330 = vmatpush1.msra.mxu0 0.0
      %331 = vmatprep.subr.mxu0 0.0
      %332 = vmatpush1.msra.mxu0 0.0
      %333 = vmatprep.subr.mxu0 0.0
      %334 = vmatpush1.msra.mxu0 0.0
      %335 = vmatprep.subr.mxu0 0.0
      %336 = vmatpush1.msra.mxu0 0.0
      %337 = vmatprep.subr.mxu0 0.0
      %338 = vmatpush1.msra.mxu0 0.0
      %339 = vmatprep.subr.mxu0 0.0
      %340 = vmatpush1.msra.mxu0 0.0
      %341 = vmatprep.subr.mxu0 0.0
      %342 = vmatpush1.msra.mxu0 0.0
      %343 = vmatprep.subr.mxu0 0.0
      %344 = vmatpush1.msra.mxu0 0.0
      %345 = vmatprep.subr.mxu0 0.0
      %346 = vmatpush1.msra.mxu0 0.0
      %347 = vmatprep.subr.mxu0 0.0
      %348 = vmatpush1.msra.mxu0 0.0
      %349 = vmatprep.subr.mxu0 0.0
      %350 = vmatpush1.msra.mxu0 0.0
      %351 = vmatprep.subr.mxu0 0.0
      %352 = vmatpush1.msra.mxu0 0.0
      %353 = vmatprep.subr.mxu0 0.0
      %354 = vmatpush1.msra.mxu0 0.0
      %355 = vmatprep.subr.mxu0 0.0
      %356 = vmatpush1.msra.mxu0 0.0
      %357 = vmatprep.subr.mxu0 0.0
      %358 = vmatpush1.msra.mxu0 0.0
      %359 = vmatprep.subr.mxu0 0.0
      %360 = vmatpush1.msra.mxu0 0.0
      %361 = vmatprep.mubr.f32.mxu0 0.0
      %362 = vmatmul.mubr.f32.gmra.mrb[0].mxu0 %v282
      %v363 = vpop.f32.mrb[0].mxu0
      %v364 = vadd.f32 %v263, %v363
      %v365 = vpop.f32.mrb[0].mxu0
      %366 = vmatprep.mubr.f32.mxu0 0.0
      %367 = vmatmul.mubr.f32.gmra.mrb[0].mxu0 %v285
      %v368 = vpop.f32.mrb[0].mxu0
      %v369 = vadd.f32 %v268, %v368
      %v370 = vpop.f32.mrb[0].mxu0
      %371 = vmatprep.mubr.f32.mxu0 0.0
      %372 = vmatmul.mubr.f32.gmra.mrb[0].mxu0 %v288
      %v373 = vpop.f32.mrb[0].mxu0
      %v374 = vadd.f32 %v273, %v373
      %v375 = vpop.f32.mrb[0].mxu0
      %376 = vmatprep.mubr.f32.mxu0 0.0
      %377 = vmatmul.mubr.f32.gmra.mrb[0].mxu0 %v291
      %v378 = vpop.f32.mrb[0].mxu0
      %v379 = vadd.f32 %v278, %v378
      %v380 = vpop.f32.mrb[0].mxu0
      %381 = vdwg.mxu0
      %v382 = vmax.f32 %v364, 0.0
      %v383 = vmax.f32 %v369, 0.0
      %v384 = vmax.f32 %v374, 0.0
      %v385 = vmax.f32 %v379, 0.0
      %v386 = vld [vmem:[%s3] sm:$0x7]
      %v387 = vld [vmem:[%s4] sm:$0x7]
      %389 = vset.pattern.permute.xlu0 0
      %390 = vperm.xlu0 %389, %v387
      %v391 = vpop.permute.xlu0 %390
      %vm393 = vcmask 261120
      %v395 = vsel %vm393, %v386, 0
      %397 = vmatprep.subr.mxu0 0.0
      %398 = vmatpush1.msra.mxu0 %v382
      %399 = vmatprep.subr.mxu0 0.0
      %400 = vmatpush1.msra.mxu0 %v383
      %401 = vmatprep.subr.mxu0 0.0
      %402 = vmatpush1.msra.mxu0 %v384
      %403 = vmatprep.subr.mxu0 0.0
      %404 = vmatpush1.msra.mxu0 %v385
      %405 = vmatprep.subr.mxu0 0.0
      %406 = vmatpush1.msra.mxu0 0.0
      %407 = vmatprep.subr.mxu0 0.0
      %408 = vmatpush1.msra.mxu0 0.0
      %409 = vmatprep.subr.mxu0 0.0
      %410 = vmatpush1.msra.mxu0 0.0
      %411 = vmatprep.subr.mxu0 0.0
      %412 = vmatpush1.msra.mxu0 0.0
      %413 = vmatprep.subr.mxu0 0.0
      %414 = vmatpush1.msra.mxu0 0.0
      %415 = vmatprep.subr.mxu0 0.0
      %416 = vmatpush1.msra.mxu0 0.0
      %417 = vmatprep.subr.mxu0 0.0
      %418 = vmatpush1.msra.mxu0 0.0
      %419 = vmatprep.subr.mxu0 0.0
      %420 = vmatpush1.msra.mxu0 0.0
      %421 = vmatprep.subr.mxu0 0.0
      %422 = vmatpush1.msra.mxu0 0.0
      %423 = vmatprep.subr.mxu0 0.0
      %424 = vmatpush1.msra.mxu0 0.0
      %425 = vmatprep.subr.mxu0 0.0
      %426 = vmatpush1.msra.mxu0 0.0
      %427 = vmatprep.subr.mxu0 0.0
      %428 = vmatpush1.msra.mxu0 0.0
      %429 = vmatprep.subr.mxu0 0.0
      %430 = vmatpush1.msra.mxu0 0.0
      %431 = vmatprep.subr.mxu0 0.0
      %432 = vmatpush1.msra.mxu0 0.0
      %433 = vmatprep.subr.mxu0 0.0
      %434 = vmatpush1.msra.mxu0 0.0
      %435 = vmatprep.subr.mxu0 0.0
      %436 = vmatpush1.msra.mxu0 0.0
      %437 = vmatprep.subr.mxu0 0.0
      %438 = vmatpush1.msra.mxu0 0.0
      %439 = vmatprep.subr.mxu0 0.0
      %440 = vmatpush1.msra.mxu0 0.0
      %441 = vmatprep.subr.mxu0 0.0
      %442 = vmatpush1.msra.mxu0 0.0
      %443 = vmatprep.subr.mxu0 0.0
      %444 = vmatpush1.msra.mxu0 0.0
      %445 = vmatprep.subr.mxu0 0.0
      %446 = vmatpush1.msra.mxu0 0.0
      %447 = vmatprep.subr.mxu0 0.0
      %448 = vmatpush1.msra.mxu0 0.0
      %449 = vmatprep.subr.mxu0 0.0
      %450 = vmatpush1.msra.mxu0 0.0
      %451 = vmatprep.subr.mxu0 0.0
      %452 = vmatpush1.msra.mxu0 0.0
      %453 = vmatprep.subr.mxu0 0.0
      %454 = vmatpush1.msra.mxu0 0.0
      %455 = vmatprep.subr.mxu0 0.0
      %456 = vmatpush1.msra.mxu0 0.0
      %457 = vmatprep.subr.mxu0 0.0
      %458 = vmatpush1.msra.mxu0 0.0
      %459 = vmatprep.subr.mxu0 0.0
      %460 = vmatpush1.msra.mxu0 0.0
      %461 = vmatprep.mubr.f32.mxu0 0.0
      %462 = vmatmul.mubr.f32.gmra.mrb[0].mxu0 %v395
      %v463 = vpop.f32.mrb[0].mxu0
      %v464 = vadd.f32 %v391, %v463
      %v465 = vpop.f32.mrb[0].mxu0
      %466 = vdwg.mxu0
      %467 = vst [vmem:[%s250] sm:$0x7] %v464
      %p468 = scmp.lt.s32.totalorder %s20, 1
      %s469 = scalar_select %p468, %s20, 1
      %p470 = scmp.lt.s32.totalorder %s21, 0
      %s471 = scalar_select %p470, %s21, 0
      %s472 = sadd.s32 %s471, %s469
      %s473 = smul.addr %s472, 4
      %s474 = scalar_lea.vmem %s5, %s473
      // Predicated region
      $region41: #{tpu_custom_call.1} parent=39 // pred_check
        %p475 = pneg %p160
      $region42: #{tpu_custom_call.1} parent=39 // pred_check_branch
        %477 = sbr.rel (%p475) target = $region44
      $region43: #{tpu_custom_call.1} parent=39 // pred_region
        _
      $region44: #{tpu_custom_call.1} parent=39 // pred_fallthru
        _
    $region40: #{tpu_custom_call.1} parent=5 // pred_fallthru
      _
    %p478 = scmp.le.s32.totalorder 2, %s11
    // Predicated region
    $region45: #{tpu_custom_call.1} parent=5 // pred_check
      %p479 = pneg %p478
    $region46: #{tpu_custom_call.1} parent=5 // pred_check_branch
      %481 = sbr.rel (%p479) target = $region48
    $region47: #{tpu_custom_call.1} parent=5 // pred_region
      %s482 = ssub.s32 %s11, 2
      // Predicated region
      $region49: #{tpu_custom_call.1} parent=47 // pred_check
        %p483 = pneg %p166
      $region50: #{tpu_custom_call.1} parent=47 // pred_check_branch
        %485 = sbr.rel (%p483) target = $region52
      $region51: #{tpu_custom_call.1} parent=47 // pred_region
        %p486 = scmp.lt.s32.totalorder %s22, 1
        %s487 = scalar_select %p486, %s22, 1
        %p488 = scmp.lt.s32.totalorder %s23, 0
        %s489 = scalar_select %p488, %s23, 0
        %s490 = sadd.s32 %s489, %s487
        %s491 = smul.addr %s490, 4
        %s492 = scalar_lea.vmem %s5, %s491
      $region52: #{tpu_custom_call.1} parent=47 // pred_fallthru
        _
    $region48: #{tpu_custom_call.1} parent=5 // pred_fallthru
      _
  $region6: #{tpu_custom_call.1} parent=0 // loop_footer
    %s15 = sadd.s32 1, %s11
  $region7: #{tpu_custom_call.1} parent=0 // loop_footer_branch
    %10 = sbr.rel target = $region3
  $region8: #{tpu_custom_call.1} parent=0 // loop_exit
    _

</llo_original>
